<compile_context>
chip_gen: v7x
topology: tpu7x:2x2x1
jax: 0.10.0
libtpu: 0.0.40
codegen_flags: <defaults>
</compile_context>

<pallas_src>
import jax
import jax.numpy as jnp
from jax.experimental import pallas as pl
from jax.experimental.pallas import tpu as pltpu


_BLOCK_TARGET_BYTES = 4 * 1024 * 1024   # ~4 MiB per block
_VMEM_LIMIT_BYTES = 32 * 1024 * 1024    # explicit budget (fits v5e/v6e/v7x)


def _identity_copy_kernel(x_ref, o_ref):
    # Pure pass-through: load the current (block_rows, lanes) tile, store it.
    o_ref[...] = x_ref[...]


def _pick_layout(total, itemsize):
    """Pick (lanes, sublane_pack, padded_total) so the flat array can be viewed
    as (rows, lanes) with lanes a multiple of 128 and rows a multiple of the
    dtype's sublane packing (8 for f32, 16 for bf16, 32 for int8)."""
    sub = max(8, 32 // itemsize)
    for lanes in (2048, 1024, 512, 256, 128):
        if total % (sub * lanes) == 0:
            return lanes, sub, total
    # Fallback: pad the tail up to the next (sub, 512)-aligned size.
    lanes = 512
    tile = sub * lanes
    padded = ((total + tile - 1) // tile) * tile
    return lanes, sub, padded


def _pick_block_rows(rows, lanes, sub, itemsize):
    """Largest multiple of `sub` that divides `rows` and keeps the block
    near _BLOCK_TARGET_BYTES."""
    target = max(sub, (_BLOCK_TARGET_BYTES // (lanes * itemsize)) // sub * sub)
    if rows <= target:
        return rows                       # full-extent block: always legal
    for cand in range(target, sub - 1, -sub):
        if rows % cand == 0:
            return cand
    return sub                            # safety net (rows is a multiple of sub)


def _flat_identity_copy(x2d):
    rows, lanes = x2d.shape
    itemsize = x2d.dtype.itemsize
    sub = max(8, 32 // itemsize)
    block_rows = _pick_block_rows(rows, lanes, sub, itemsize)
    grid = (rows // block_rows,)
    nbytes = rows * lanes * itemsize

    return pl.pallas_call(
        _identity_copy_kernel,
        out_shape=jax.ShapeDtypeStruct((rows, lanes), x2d.dtype),
        grid_spec=pltpu.PrefetchScalarGridSpec(
            num_scalar_prefetch=0,
            grid=grid,
            in_specs=[pl.BlockSpec((block_rows, lanes), lambda i: (i, 0))],
            out_specs=pl.BlockSpec((block_rows, lanes), lambda i: (i, 0)),
        ),
        compiler_params=pltpu.CompilerParams(
            dimension_semantics=("parallel",),
            vmem_limit_bytes=_VMEM_LIMIT_BYTES,
        ),
        cost_estimate=pl.CostEstimate(
            flops=0, transcendentals=0, bytes_accessed=2 * nbytes),
        # Let XLA reuse the input buffer for the output (no extra HBM buffer
        # when the operand is donated or an intermediate value inside a jit).
        input_output_aliases={0: 0},
    )(x2d)


def dummy_identity_forward(x, param):
    """Equivalent of DummyIdentity.forward(x) == x.flatten(1).

    x: (B, ...) array.  param: scalar parameter (unused, as in PyTorch).
    Returns (B, prod(trailing dims)) array of the same dtype.
    """
    del param  # parameter exists but is not used in the forward pass
    B = x.shape[0]
    N = 1
    for d in x.shape[1:]:
        N *= d
    T = B * N
    itemsize = x.dtype.itemsize

    lanes, _sub, padded = _pick_layout(T, itemsize)

    # Glue: metadata-only reshape to a flat, sublane-full / lane-dense slab.
    flat = jnp.reshape(x, (T,))
    if padded != T:
        flat = jnp.pad(flat, (0, padded - T))
    rows = padded // lanes
    x2d = jnp.reshape(flat, (rows, lanes))

    out2d = _flat_identity_copy(x2d)

    out_flat = jnp.reshape(out2d, (padded,))
    if padded != T:
        out_flat = out_flat[:T]
    return jnp.reshape(out_flat, (B, N))


if __name__ == "__main__":
    key = jax.random.PRNGKey(0)

    # Deterministic parameter init: nn.Parameter(torch.tensor(0.0)) — unused.
    param = jnp.float32(0.0)

    # Small NCHW conv-style input.
    B, C, H, W = 2, 4, 16, 16
    x = jax.random.normal(key, (B, C, H, W), dtype=jnp.float32)

    out = jax.block_until_ready(dummy_identity_forward(x, param))

    # Verify against the reference semantics: x.flatten(1)
    ref = jnp.reshape(x, (B, C * H * W))
    assert out.shape == (B, C * H * W), out.shape
    assert out.dtype == x.dtype, out.dtype
    assert bool(jnp.array_equal(out, ref)), "mismatch vs x.flatten(1)"

    print("KERNEL_OK")
</pallas_src>

<mosaic_0001>
module attributes {stable_mosaic.version = 11 : i64} {
  func.func @_identity_copy_kernel(%arg0: i32, %arg1: memref<8x256xf32, #tpu.memory_space<vmem>>, %arg2: memref<8x256xf32, #tpu.memory_space<vmem>>) attributes {dimension_semantics = [#tpu.dimension_semantics<parallel>], iteration_bounds = array<i64: 1>, scalar_prefetch = 0 : i64, scratch_operands = 0 : i64, tpu.core_type = #tpu.core_type<tc>, window_params = [{transform_indices = @transform_0, window_bounds = array<i64: 8, 256>}, {transform_indices = @transform_1, window_bounds = array<i64: 8, 256>}]} {
    %c0 = arith.constant 0 : index
    %c0_0 = arith.constant 0 : index
    %0 = vector.load %arg1[%c0, %c0_0] : memref<8x256xf32, #tpu.memory_space<vmem>>, vector<8x256xf32>
    %c0_1 = arith.constant 0 : index
    %c0_2 = arith.constant 0 : index
    %1 = vector.load %arg2[%c0_1, %c0_2] : memref<8x256xf32, #tpu.memory_space<vmem>>, vector<8x256xf32>
    tpu.vector_store %arg2[%c0_1, %c0_2], %0 {strides = array<i32>} : memref<8x256xf32, #tpu.memory_space<vmem>>, vector<8x256xf32>,
    return
  }
  func.func @transform_0(%arg0: i32) -> (i32, i32) {
    %c0_i32 = arith.constant 0 : i32
    %c0_i32_0 = arith.constant 0 : i32
    return %arg0, %c0_i32 : i32, i32
  }
  func.func @transform_1(%arg0: i32) -> (i32, i32) {
    %c0_i32 = arith.constant 0 : i32
    %c0_i32_0 = arith.constant 0 : i32
    return %arg0, %c0_i32 : i32, i32
  }
}

</mosaic_0001>

<llo_original>
// kernel: tpu_custom_call.1
$region0: #{tpu_custom_call.1}
  #allocation0 [shape = 'u32[]', space=smem, size = 0x4, offset = 0x4, fixed_abs, tag = 'smem constant byte address 0x4 - core index']
  #allocation1 [shape = 'u32[144,128]{1,0:T(1,128)}', space=vmem, size = 0x12000, scoped, tag = 'internal scratch']
  %s0 = inlined_call_operand.hbm [shape: f32[8,256], index: 0, kind: input, shape index: {}, may-alias: {0,1}]
  %s1 = inlined_call_operand.hbm [shape: f32[8,256], index: 1, kind: output, shape index: {}, may-alias: {0,1}]
  %s2 = sld [smem:[#allocation0]]
  $region18: #{tpu_custom_call.1} parent=0
    _
  %s4 = ssub.s32 1, %s2
  %s5 = scalar_select 0, %s4, %s2
  $region1: #{tpu_custom_call.1} parent=0
    #allocation2 [shape = 'u8[8192]{0}', space=vmem, size = 0x2000, scoped, tag = 'input window, operand 0, single buffered']
    #allocation3 [shape = 's32[1]{0}', space=sflag, size = 0x4, scoped, tag = 'scoped memory for tpu_custom_call.1']
    #allocation4 [shape = 's32[1]{0}', space=sflag, size = 0x4, scoped, tag = 'scoped memory for tpu_custom_call.1']
    #allocation5 [shape = 'u8[8192]{0}', space=vmem, size = 0x2000, scoped, tag = 'output window, operand 0, single buffered']
    %6 = vsyncpa [#allocation3], 0
    %7 = vsyncpa [#allocation4], 0
    // Predicated region
    $region2: #{tpu_custom_call.1} parent=1 // pred_check
      _
    $region3: #{tpu_custom_call.1} parent=1 // pred_check_branch
      %9 = sbr.rel (0) target = $region5
    $region4: #{tpu_custom_call.1} parent=1 // pred_region
      %s11 = ssub.s32 256, 256
      %12 = vsyncadd [#allocation3], %s11
      %s14 = sshll.u32 [#allocation2], 4
      %s15 = int_to_ptr.vmem [resolvable:$true] %s14
      %17 = dma.hbm_to_vmem [thread:$0]  %s0, 256, %s15, [#allocation3]
    $region5: #{tpu_custom_call.1} parent=1 // pred_fallthru
      _
    // Predicated region
    $region6: #{tpu_custom_call.1} parent=1 // pred_check
      _
    $region7: #{tpu_custom_call.1} parent=1 // pred_check_branch
      %19 = sbr.rel (0) target = $region9
    $region8: #{tpu_custom_call.1} parent=1 // pred_region
      %20 = dma.done [#allocation3], 256
    $region9: #{tpu_custom_call.1} parent=1 // pred_fallthru
      _
    %v21 = vld [vmem:[#allocation2] sm:$0xff]
    %v22 = vld [vmem:[#allocation2 + $0x8] sm:$0xff]
    %23 = vst [vmem:[#allocation5] sm:$0xff] %v21
    %24 = vst [vmem:[#allocation5 + $0x8] sm:$0xff] %v22
    // Predicated region
    $region10: #{tpu_custom_call.1} parent=1 // pred_check
      _
    $region11: #{tpu_custom_call.1} parent=1 // pred_check_branch
      %26 = sbr.rel (0) target = $region13
    $region12: #{tpu_custom_call.1} parent=1 // pred_region
      %s28 = ssub.s32 256, 256
      %29 = vsyncadd [#allocation4], %s28
      %s31 = sshll.u32 [#allocation5], 4
      %s32 = int_to_ptr.vmem [resolvable:$true] %s31
      %34 = dma.vmem_to_hbm [thread:$0]  %s32, 256, %s1, [#allocation4]
    $region13: #{tpu_custom_call.1} parent=1 // pred_fallthru
      _
    // Predicated region
    $region14: #{tpu_custom_call.1} parent=1 // pred_check
      _
    $region15: #{tpu_custom_call.1} parent=1 // pred_check_branch
      %36 = sbr.rel (0) target = $region17
    $region16: #{tpu_custom_call.1} parent=1 // pred_region
      %37 = dma.done [#allocation4], 256
    $region17: #{tpu_custom_call.1} parent=1 // pred_fallthru
      _
    %38 = vsyncpa [#allocation3], 1
    %39 = vsyncpa [#allocation4], 1

</llo_original>
